<compile_context>
chip_gen: v5e
topology: v5e:2x2
jax: 0.10.0
libtpu: 0.0.40
codegen_flags: <defaults>
</compile_context>

<pallas_src>
import functools
import math

import jax
import jax.numpy as jnp
from jax.experimental import pallas as pl
from jax.experimental.pallas import tpu as pltpu


def _round_up(x, m):
    return (x + m - 1) // m * m


# ----------------------------- fused Pallas kernel -----------------------------
# One grid step == one chunk window.  Refs:
#   s_ref    : [n_layers]      SMEM   gamma * softmax(mix weights)
#   h0_ref   : [Rp, Hp]        VMEM   masked embedding output for this chunk
#   mask_ref : [Rp, Hp]        VMEM   attention mask broadcast over lanes
#   w_ref    : [L, Hp, Hp]     VMEM   stacked layer weights (zero-padded)
#   b_ref    : [L, 1, Hp]      VMEM   stacked layer biases  (zero-padded)
#   proj_ref : [Hp, Np]        VMEM   projection weights (only if hidden != n_out)
#   o_ref    : [Rp, Np]        VMEM   lane-dense output block for this chunk

def _fused_chunk_kernel(s_ref, h0_ref, mask_ref, w_ref, b_ref, *rest,
                        num_layers, n_layers, has_proj):
    if has_proj:
        proj_ref, o_ref = rest
    else:
        (o_ref,) = rest

    h = h0_ref[...]            # [Rp, Hp]
    m = mask_ref[...]          # [Rp, Hp]

    # HF hidden_states order: [embeddings, layer_1, ..., layer_L]; mix the last n_layers.
    first_mixed = (num_layers + 1) - n_layers

    acc = jnp.zeros_like(h)
    if first_mixed <= 0:                       # embedding output participates in the mix
        acc = acc + s_ref[0] * h

    # tiny static layer count -> fully unrolled; everything stays in VMEM/vregs
    for li in range(num_layers):
        h = jnp.tanh(
            jnp.dot(h, w_ref[li], preferred_element_type=jnp.float32) + b_ref[li]
        ) * m
        hs_idx = li + 1
        if hs_idx >= max(first_mixed, 0):
            acc = acc + s_ref[hs_idx - first_mixed] * h

    if has_proj:
        o_ref[...] = jnp.dot(acc, proj_ref[...], preferred_element_type=jnp.float32)
    else:
        o_ref[...] = acc


def fused_chunks(s, h0, mask, w, b, proj_w, *, n_layers):
    """Run the fused backbone+ScalarMix+projection kernel over all chunk windows.

    h0/mask: [C, Rp, Hp];  w: [L, Hp, Hp];  b: [L, 1, Hp];  proj_w: [Hp, Np] or None.
    Returns [C, Rp, Np] (Np == Hp when there is no projection)."""
    C, Rp, Hp = h0.shape
    L = w.shape[0]
    has_proj = proj_w is not None
    Np = proj_w.shape[1] if has_proj else Hp

    kernel = functools.partial(_fused_chunk_kernel, num_layers=L,
                               n_layers=n_layers, has_proj=has_proj)
    in_specs = [
        pl.BlockSpec(memory_space=pltpu.MemorySpace.SMEM),        # mix weights (scalars)
        pl.BlockSpec((None, Rp, Hp), lambda c: (c, 0, 0)),        # h0 for chunk c
        pl.BlockSpec((None, Rp, Hp), lambda c: (c, 0, 0)),        # mask for chunk c
        pl.BlockSpec((L, Hp, Hp), lambda c: (0, 0, 0)),           # layer weights (shared)
        pl.BlockSpec((L, 1, Hp), lambda c: (0, 0, 0)),            # layer biases  (shared)
    ]
    args = [s, h0, mask, w, b]
    if has_proj:
        in_specs.append(pl.BlockSpec((Hp, Np), lambda c: (0, 0)))  # projection (shared)
        args.append(proj_w)

    return pl.pallas_call(
        kernel,
        out_shape=jax.ShapeDtypeStruct((C, Rp, Np), jnp.float32),
        grid=(C,),
        in_specs=in_specs,
        out_specs=pl.BlockSpec((None, Rp, Np), lambda c: (c, 0, 0)),
        compiler_params=pltpu.CompilerParams(
            dimension_semantics=("parallel",)),   # chunk axis -> both TensorCores on v7x
    )(*args)


# --------------------------- HuggingfaceModel (Pallas) ---------------------------

class HuggingfaceModelPallas:
    def __init__(self, key, *, vocab_size=100, hidden_size=32, num_hidden_layers=3,
                 n_layers=2, n_out=16, stride=8, max_position_embeddings=16):
        self.hidden_size = hidden_size
        self.num_hidden_layers = num_hidden_layers
        self.n_layers = n_layers or num_hidden_layers
        self.n_out = n_out if n_out else hidden_size
        self.max_len = max_position_embeddings - 2
        self.stride = min(stride, self.max_len)

        keys = jax.random.split(key, num_hidden_layers + 3)
        # Unpadded parameters (also used by the pure-JAX reference).
        self.params = {
            "embed": jax.random.normal(keys[0], (vocab_size, hidden_size), jnp.float32),
            "layer_w": [
                jax.random.normal(keys[1 + i], (hidden_size, hidden_size), jnp.float32)
                / math.sqrt(hidden_size)
                for i in range(num_hidden_layers)
            ],
            "layer_b": [jnp.zeros((hidden_size,), jnp.float32)
                        for _ in range(num_hidden_layers)],
        }
        # ScalarMix parameters (normally zeros / 1.0; small deterministic values here).
        self.mix_weights = 0.1 * jax.random.normal(keys[-2], (self.n_layers,), jnp.float32)
        self.mix_gamma = 1.0
        # Projection (Linear, bias=False) iff hidden_size != n_out, else Identity.
        if self.hidden_size == self.n_out:
            self.proj_w = None
        else:
            self.proj_w = (jax.random.normal(keys[-1], (hidden_size, self.n_out), jnp.float32)
                           / math.sqrt(hidden_size))

        # ---- zero-pad everything once to lane-dense, MXU-friendly shapes ----
        H = hidden_size
        self.Hp = _round_up(H, 128)
        self.Np = _round_up(self.n_out, 128) if self.proj_w is not None else self.Hp

        self.embed_pad = jnp.zeros((vocab_size, self.Hp), jnp.float32).at[:, :H].set(
            self.params["embed"])
        self.w_pad = jnp.zeros((num_hidden_layers, self.Hp, self.Hp), jnp.float32)
        self.b_pad = jnp.zeros((num_hidden_layers, 1, self.Hp), jnp.float32)
        for i in range(num_hidden_layers):
            self.w_pad = self.w_pad.at[i, :H, :H].set(self.params["layer_w"][i])
            self.b_pad = self.b_pad.at[i, 0, :H].set(self.params["layer_b"][i])
        if self.proj_w is None:
            self.proj_pad = None
        else:
            self.proj_pad = jnp.zeros((self.Hp, self.Np), jnp.float32).at[
                :H, :self.n_out].set(self.proj_w)

        self._jit_forward = jax.jit(self._forward_impl)

    # ------------------------------------------------------------------
    def _forward_impl(self, input_ids, attention_mask):
        B, seq_len = input_ids.shape
        max_len, stride = self.max_len, self.stride
        Hp = self.Hp

        # Chunk window starts, exactly as the PyTorch strided loop produces them.
        upper = (seq_len - max_len + stride - 1) // stride * stride + 1
        starts = [0] + list(range(stride, upper, stride))
        C = len(starts)

        # Pad the sequence so every window is full length (the synthetic backend is
        # position-wise, so padded positions never influence real ones; they are
        # sliced away at the end).
        pad_len = starts[-1] + max_len
        if pad_len > seq_len:
            pad = pad_len - seq_len
            ids_p = jnp.pad(input_ids, ((0, 0), (0, pad)))
            am_p = jnp.pad(attention_mask, ((0, 0), (0, pad)))
        else:
            ids_p, am_p = input_ids, attention_mask

        ids_c = jnp.stack([ids_p[:, s:s + max_len] for s in starts], 0)        # [C,B,T]
        am_c = jnp.stack([am_p[:, s:s + max_len] for s in starts], 0)          # [C,B,T]
        am_c = am_c.astype(jnp.float32)

        T = max_len
        R = B * T
        Rp = _round_up(R, 8)

        # Embedding lookup + masking: cheap XLA gather glue feeding the fused kernel.
        h0 = jnp.take(self.embed_pad, ids_c, axis=0)                           # [C,B,T,Hp]
        mask = am_c[..., None]                                                 # [C,B,T,1]
        h0 = (h0 * mask).reshape(C, R, Hp)
        mask_b = jnp.broadcast_to(mask, (C, B, T, Hp)).reshape(C, R, Hp)
        if Rp > R:
            h0 = jnp.pad(h0, ((0, 0), (0, Rp - R), (0, 0)))
            mask_b = jnp.pad(mask_b, ((0, 0), (0, Rp - R), (0, 0)))

        # gamma folded into the softmaxed mix weights -> no finalize pass in the kernel.
        s = self.mix_gamma * jax.nn.softmax(self.mix_weights.astype(jnp.float32))

        out = fused_chunks(s, h0, mask_b, self.w_pad, self.b_pad, self.proj_pad,
                           n_layers=self.n_layers)                             # [C,Rp,Np]

        Np = out.shape[-1]
        out = out[:, :R, :].reshape(C, B, T, Np)

        # Assemble the strided-window result exactly like the PyTorch forward.
        pieces = [out[0]]
        for c in range(1, C):
            pieces.append(out[c][:, max_len - stride:])
        x = jnp.concatenate(pieces, axis=1)
        return x[:, :seq_len, :self.n_out]

    def __call__(self, input_ids, attention_mask):
        return self._jit_forward(input_ids, attention_mask)


# ------------------------------ pure-JAX reference ------------------------------

def reference_forward(model, input_ids, attention_mask):
    def backend(ids, am):
        mask = am.astype(jnp.float32)[..., None]
        h = jnp.take(model.params["embed"], ids, axis=0) * mask
        hs = [h]
        for wl, bl in zip(model.params["layer_w"], model.params["layer_b"]):
            h = jnp.tanh(h @ wl + bl) * mask
            hs.append(h)
        return hs

    def mix(stack):
        s = jax.nn.softmax(model.mix_weights)
        return model.mix_gamma * jnp.einsum("l,lbth->bth", s, stack)

    x = mix(jnp.stack(backend(input_ids[:, :model.max_len],
                              attention_mask[:, :model.max_len])[-model.n_layers:], 0))
    seq_len = input_ids.shape[1]
    upper = (seq_len - model.max_len + model.stride - 1) // model.stride * model.stride + 1
    for i in range(model.stride, upper, model.stride):
        part = mix(jnp.stack(backend(input_ids[:, i:i + model.max_len],
                                     attention_mask[:, i:i + model.max_len])[-model.n_layers:], 0))
        x = jnp.concatenate([x, part[:, model.max_len - model.stride:]], axis=1)
    if model.proj_w is None:
        return x
    return x @ model.proj_w


# -------------------------------------- main --------------------------------------

if __name__ == "__main__":
    key = jax.random.PRNGKey(0)
    k_model, k_ids = jax.random.split(key)

    B, SEQ = 2, 22  # SEQ > max_len(=14) so the strided window loop runs at least once
    model = HuggingfaceModelPallas(k_model, vocab_size=100, hidden_size=32,
                                   num_hidden_layers=3, n_layers=2, n_out=16,
                                   stride=8, max_position_embeddings=16)

    input_ids = jax.random.randint(k_ids, (B, SEQ), 0, 100, dtype=jnp.int32)
    attention_mask = jnp.ones((B, SEQ), jnp.int32)

    out = model(input_ids, attention_mask)
    out = jax.block_until_ready(out)

    assert out.shape == (B, SEQ, model.n_out), out.shape

    ref = reference_forward(model, input_ids, attention_mask)
    assert jnp.allclose(out, ref, rtol=2e-2, atol=2e-2), float(jnp.max(jnp.abs(out - ref)))

    print("KERNEL_OK")
</pallas_src>

<mosaic_0001>
module attributes {stable_mosaic.version = 11 : i64} {
  func.func @_fused_chunk_kernel(%arg0: i32, %arg1: memref<2xf32, #tpu.memory_space<smem>>, %arg2: memref<1x32x128xf32, #tpu.memory_space<vmem>>, %arg3: memref<1x32x128xf32, #tpu.memory_space<vmem>>, %arg4: memref<3x128x128xf32, #tpu.memory_space<vmem>>, %arg5: memref<3x1x128xf32, #tpu.memory_space<vmem>>, %arg6: memref<128x128xf32, #tpu.memory_space<vmem>>, %arg7: memref<1x32x128xf32, #tpu.memory_space<vmem>>) attributes {dimension_semantics = [#tpu.dimension_semantics<parallel>], iteration_bounds = array<i64: 2>, scalar_prefetch = 0 : i64, scratch_operands = 0 : i64, tpu.core_type = #tpu.core_type<tc>, window_params = [{transform_indices = @transform_0, window_bounds = array<i64: 2>}, {transform_indices = @transform_1, window_bounds = array<i64: 1, 32, 128>}, {transform_indices = @transform_2, window_bounds = array<i64: 1, 32, 128>}, {pipeline_mode = #tpu.pipeline_mode<synchronous>, transform_indices = @transform_3, window_bounds = array<i64: 3, 128, 128>}, {pipeline_mode = #tpu.pipeline_mode<synchronous>, transform_indices = @transform_4, window_bounds = array<i64: 3, 1, 128>}, {pipeline_mode = #tpu.pipeline_mode<synchronous>, transform_indices = @transform_5, window_bounds = array<i64: 128, 128>}, {transform_indices = @transform_6, window_bounds = array<i64: 1, 32, 128>}]} {
    %c0 = arith.constant 0 : index
    %c0_0 = arith.constant 0 : index
    %c0_1 = arith.constant 0 : index
    %0 = vector.load %arg2[%c0, %c0_0, %c0_1] : memref<1x32x128xf32, #tpu.memory_space<vmem>>, vector<1x32x128xf32>
    %1 = vector.shape_cast %0 : vector<1x32x128xf32> to vector<32x128xf32>
    %c0_2 = arith.constant 0 : index
    %c0_3 = arith.constant 0 : index
    %c0_4 = arith.constant 0 : index
    %2 = vector.load %arg3[%c0_2, %c0_3, %c0_4] : memref<1x32x128xf32, #tpu.memory_space<vmem>>, vector<1x32x128xf32>
    %3 = vector.shape_cast %2 : vector<1x32x128xf32> to vector<32x128xf32>
    %cst = arith.constant 0.000000e+00 : f32
    %4 = vector.broadcast %cst : f32 to vector<32x128xf32>
    %c0_5 = arith.constant 0 : index
    %c0_6 = arith.constant 0 : index
    %c0_7 = arith.constant 0 : index
    %5 = vector.load %arg4[%c0_5, %c0_6, %c0_7] : memref<3x128x128xf32, #tpu.memory_space<vmem>>, vector<1x128x128xf32>
    %6 = vector.shape_cast %5 : vector<1x128x128xf32> to vector<128x128xf32>
    %cst_8 = arith.constant dense<0.000000e+00> : vector<32x128xf32>
    %7 = tpu.matmul %1, %6, %cst_8 {dimension_numbers = #tpu.dot_dimension_numbers<[1], [0], [0], [1], [0, 0, 1, 1], [], []>} : vector<32x128xf32>, vector<128x128xf32>, vector<32x128xf32> -> vector<32x128xf32>
    %c0_9 = arith.constant 0 : index
    %c0_10 = arith.constant 0 : index
    %c0_11 = arith.constant 0 : index
    %8 = vector.load %arg5[%c0_9, %c0_10, %c0_11] : memref<3x1x128xf32, #tpu.memory_space<vmem>>, vector<1x1x128xf32>
    %9 = vector.shape_cast %8 : vector<1x1x128xf32> to vector<1x128xf32>
    %10 = vector.broadcast %9 : vector<1x128xf32> to vector<32x128xf32>
    %11 = arith.addf %7, %10 : vector<32x128xf32>
    %12 = math.tanh %11 : vector<32x128xf32>
    %13 = arith.mulf %12, %3 : vector<32x128xf32>
    %c1 = arith.constant 1 : index
    %c0_12 = arith.constant 0 : index
    %c0_13 = arith.constant 0 : index
    %14 = vector.load %arg4[%c1, %c0_12, %c0_13] : memref<3x128x128xf32, #tpu.memory_space<vmem>>, vector<1x128x128xf32>
    %15 = vector.shape_cast %14 : vector<1x128x128xf32> to vector<128x128xf32>
    %cst_14 = arith.constant dense<0.000000e+00> : vector<32x128xf32>
    %16 = tpu.matmul %13, %15, %cst_14 {dimension_numbers = #tpu.dot_dimension_numbers<[1], [0], [0], [1], [0, 0, 1, 1], [], []>} : vector<32x128xf32>, vector<128x128xf32>, vector<32x128xf32> -> vector<32x128xf32>
    %c1_15 = arith.constant 1 : index
    %c0_16 = arith.constant 0 : index
    %c0_17 = arith.constant 0 : index
    %17 = vector.load %arg5[%c1_15, %c0_16, %c0_17] : memref<3x1x128xf32, #tpu.memory_space<vmem>>, vector<1x1x128xf32>
    %18 = vector.shape_cast %17 : vector<1x1x128xf32> to vector<1x128xf32>
    %19 = vector.broadcast %18 : vector<1x128xf32> to vector<32x128xf32>
    %20 = arith.addf %16, %19 : vector<32x128xf32>
    %21 = math.tanh %20 : vector<32x128xf32>
    %22 = arith.mulf %21, %3 : vector<32x128xf32>
    %c0_18 = arith.constant 0 : index
    %23 = memref.load %arg1[%c0_18] : memref<2xf32, #tpu.memory_space<smem>>
    %24 = vector.broadcast %23 : f32 to vector<32x128xf32>
    %25 = arith.mulf %24, %22 : vector<32x128xf32>
    %26 = arith.addf %4, %25 : vector<32x128xf32>
    %c2 = arith.constant 2 : index
    %c0_19 = arith.constant 0 : index
    %c0_20 = arith.constant 0 : index
    %27 = vector.load %arg4[%c2, %c0_19, %c0_20] : memref<3x128x128xf32, #tpu.memory_space<vmem>>, vector<1x128x128xf32>
    %28 = vector.shape_cast %27 : vector<1x128x128xf32> to vector<128x128xf32>
    %cst_21 = arith.constant dense<0.000000e+00> : vector<32x128xf32>
    %29 = tpu.matmul %22, %28, %cst_21 {dimension_numbers = #tpu.dot_dimension_numbers<[1], [0], [0], [1], [0, 0, 1, 1], [], []>} : vector<32x128xf32>, vector<128x128xf32>, vector<32x128xf32> -> vector<32x128xf32>
    %c2_22 = arith.constant 2 : index
    %c0_23 = arith.constant 0 : index
    %c0_24 = arith.constant 0 : index
    %30 = vector.load %arg5[%c2_22, %c0_23, %c0_24] : memref<3x1x128xf32, #tpu.memory_space<vmem>>, vector<1x1x128xf32>
    %31 = vector.shape_cast %30 : vector<1x1x128xf32> to vector<1x128xf32>
    %32 = vector.broadcast %31 : vector<1x128xf32> to vector<32x128xf32>
    %33 = arith.addf %29, %32 : vector<32x128xf32>
    %34 = math.tanh %33 : vector<32x128xf32>
    %35 = arith.mulf %34, %3 : vector<32x128xf32>
    %c1_25 = arith.constant 1 : index
    %36 = memref.load %arg1[%c1_25] : memref<2xf32, #tpu.memory_space<smem>>
    %37 = vector.broadcast %36 : f32 to vector<32x128xf32>
    %38 = arith.mulf %37, %35 : vector<32x128xf32>
    %39 = arith.addf %26, %38 : vector<32x128xf32>
    %c0_26 = arith.constant 0 : index
    %c0_27 = arith.constant 0 : index
    %40 = vector.load %arg6[%c0_26, %c0_27] : memref<128x128xf32, #tpu.memory_space<vmem>>, vector<128x128xf32>
    %cst_28 = arith.constant dense<0.000000e+00> : vector<32x128xf32>
    %41 = tpu.matmul %39, %40, %cst_28 {dimension_numbers = #tpu.dot_dimension_numbers<[1], [0], [0], [1], [0, 0, 1, 1], [], []>} : vector<32x128xf32>, vector<128x128xf32>, vector<32x128xf32> -> vector<32x128xf32>
    %c0_29 = arith.constant 0 : index
    %c0_30 = arith.constant 0 : index
    %c0_31 = arith.constant 0 : index
    %42 = vector.load %arg7[%c0_29, %c0_30, %c0_31] : memref<1x32x128xf32, #tpu.memory_space<vmem>>, vector<1x32x128xf32>
    %43 = vector.shape_cast %42 : vector<1x32x128xf32> to vector<32x128xf32>
    %44 = vector.shape_cast %41 : vector<32x128xf32> to vector<1x32x128xf32>
    tpu.vector_store %arg7[%c0_29, %c0_30, %c0_31], %44 {strides = array<i32>} : memref<1x32x128xf32, #tpu.memory_space<vmem>>, vector<1x32x128xf32>,
    return
  }
  func.func @transform_0(%arg0: i32) -> i32 {
    %c0_i32 = arith.constant 0 : i32
    %c0_i32_0 = arith.constant 0 : i32
    return %c0_i32 : i32
  }
  func.func @transform_1(%arg0: i32) -> (i32, i32, i32) {
    %c0_i32 = arith.constant 0 : i32
    %c0_i32_0 = arith.constant 0 : i32
    %c0_i32_1 = arith.constant 0 : i32
    return %arg0, %c0_i32, %c0_i32_0 : i32, i32, i32
  }
  func.func @transform_2(%arg0: i32) -> (i32, i32, i32) {
    %c0_i32 = arith.constant 0 : i32
    %c0_i32_0 = arith.constant 0 : i32
    %c0_i32_1 = arith.constant 0 : i32
    return %arg0, %c0_i32, %c0_i32_0 : i32, i32, i32
  }
  func.func @transform_3(%arg0: i32) -> (i32, i32, i32) {
    %c0_i32 = arith.constant 0 : i32
    %c0_i32_0 = arith.constant 0 : i32
    %c0_i32_1 = arith.constant 0 : i32
    %c0_i32_2 = arith.constant 0 : i32
    return %c0_i32, %c0_i32_0, %c0_i32_1 : i32, i32, i32
  }
  func.func @transform_4(%arg0: i32) -> (i32, i32, i32) {
    %c0_i32 = arith.constant 0 : i32
    %c0_i32_0 = arith.constant 0 : i32
    %c0_i32_1 = arith.constant 0 : i32
    %c0_i32_2 = arith.constant 0 : i32
    return %c0_i32, %c0_i32_0, %c0_i32_1 : i32, i32, i32
  }
  func.func @transform_5(%arg0: i32) -> (i32, i32) {
    %c0_i32 = arith.constant 0 : i32
    %c0_i32_0 = arith.constant 0 : i32
    %c0_i32_1 = arith.constant 0 : i32
    return %c0_i32, %c0_i32_0 : i32, i32
  }
  func.func @transform_6(%arg0: i32) -> (i32, i32, i32) {
    %c0_i32 = arith.constant 0 : i32
    %c0_i32_0 = arith.constant 0 : i32
    %c0_i32_1 = arith.constant 0 : i32
    return %arg0, %c0_i32, %c0_i32_0 : i32, i32, i32
  }
}

</mosaic_0001>

<llo_original>
// kernel: squeeze.2
$region0: #{squeeze.2}
  %s0 = inlined_call_operand.vmem [shape: f32[1,28,128], index: 0, kind: input, shape index: {}]
  %s1 = inlined_call_operand.vmem [shape: f32[2,14,128], index: 1, kind: output, shape index: {}]
  %v2 = vld [vmem:[%s0] sm:$0xff]
  %3 = vst [vmem:[%s1] sm:$0xff] %v2
  %s4 = scalar_lea.vmem %s0, 8
  %v5 = vld [vmem:[%s4] sm:$0xff]
  %s6 = scalar_lea.vmem %s1, 8
  %7 = vst [vmem:[%s6] sm:$0x3f] %v5
  %s8 = scalar_lea.vmem %s1, 10
  %9 = vst [vmem:[%s8] sm:$0xc0] %v5
  %s10 = scalar_lea.vmem %s0, 16
  %v11 = vld [vmem:[%s10] sm:$0xff]
  %s12 = scalar_lea.vmem %s1, 18
  %13 = vst [vmem:[%s12] sm:$0xff] %v11
  %s14 = scalar_lea.vmem %s0, 24
  %v15 = vld [vmem:[%s14] sm:$0xf]
  %s16 = scalar_lea.vmem %s1, 26
  %17 = vst [vmem:[%s16] sm:$0xf] %v15

// kernel: _forward_impl.1
$region0: #{_forward_impl.1}
  #allocation0 [shape = 'u32[]', space=smem, size = 0x4, offset = 0x4, fixed_abs, tag = 'smem constant byte address 0x4 - core index']
  #allocation1 [shape = 'u32[72,128]{1,0:T(1,128)}', space=vmem, size = 0x9000, scoped, tag = 'internal scratch']
  %s0 = inlined_call_operand.vmem [shape: f32[2], index: 0, kind: input, shape index: {}]
  %s1 = inlined_call_operand.vmem [shape: f32[2,32,128], index: 1, kind: input, shape index: {}]
  %s2 = inlined_call_operand.vmem [shape: f32[2,32,128], index: 2, kind: input, shape index: {}]
  %s3 = inlined_call_operand.vmem [shape: f32[3,128,128], index: 3, kind: input, shape index: {}]
  %s4 = inlined_call_operand.vmem [shape: f32[3,1,128], index: 4, kind: input, shape index: {}]
  %s5 = inlined_call_operand.vmem [shape: f32[128,128], index: 5, kind: input, shape index: {}]
  %s6 = inlined_call_operand.vmem [shape: f32[2,32,128], index: 6, kind: output, shape index: {}]
  %s7 = sld [smem:[#allocation0]]
  $region61: #{_forward_impl.1} parent=0
    _
  %s9 = ssub.s32 1, %s7
  %s10 = scalar_select 0, %s9, %s7
  $region1: #{_forward_impl.1} parent=0
    #allocation2 [shape = 'u8[512]{0}', space=smem, size = 0x200, scoped, tag = 'input window, operand 0, single buffered']
    #allocation3 [shape = 's32[2]{0}', space=sflag, size = 0x8, scoped, tag = 'scoped memory for _forward_impl.1']
    %11 = vsyncpa [#allocation3], 0
    loop: start=0, step=1, limit=4
    $region2: #{_forward_impl.1} parent=1 // loop_pre_header
      _
    $region3: #{_forward_impl.1} parent=1 // loop_header
      %s13 = sphi 0, %s17
      %p14 = scmp.ge.s32.totalorder %s13, 4
      %s21 = sphi 0, %s21
      %s23 = sphi 0, %s21
      %s24 = sphi 0, %s23
      %s38 = sphi 0, %s24
      %s44 = sphi 0, %s46
      %s47 = sphi 0, %s44
      %s48 = sphi 0, %s47
      %s64 = sphi 0, %s48
      %s70 = sphi 0, %s72
      %s73 = sphi 0, %s70
      %s74 = sphi 0, %s73
      %s90 = sphi 0, %s74
      %s94 = sphi 0, %s94
      %s96 = sphi 0, %s94
      %s97 = sphi 0, %s96
      %s111 = sphi 0, %s97
      %s115 = sphi 0, %s115
      %s117 = sphi 0, %s115
      %s118 = sphi 0, %s117
      %s132 = sphi 0, %s118
      %s136 = sphi 0, %s136
      %s138 = sphi 0, %s136
      %s139 = sphi 0, %s138
      %s153 = sphi 0, %s139
      %s159 = sphi 0, %s161
      %s162 = sphi 0, %s159
      %s163 = sphi 0, %s162
      %s179 = sphi 0, %s163
    $region4: #{_forward_impl.1} parent=1 // loop_header_branch
      %16 = sbr.rel (%p14) target = $region8
    $region5: #{_forward_impl.1} parent=1 // loop_body
      %s18 = ssub.s32 %s13, 1
      %s19 = ssub.s32 %s13, 2
      %s20 = sadd.s32 %s13, 1
      %s22 = sadd.s32 %s21, 1
      %p25 = scmp.eq.s32.totalorder %s13, 1
      %p26 = scmp.ne.s32.totalorder %s21, %s23
      %p27 = scmp.eq.s32.totalorder %s13, 0
      %p28 = por %p26, %p27
      %p29 = scmp.ne.s32.totalorder %s21, %s23
      %p30 = scmp.eq.s32.totalorder %s18, 1
      %p31 = por %p29, %p30
      %p32 = scmp.ne.s32.totalorder %s23, %s24
      %p33 = scmp.eq.s32.totalorder %s18, 0
      %p34 = por %p32, %p33
      %p35 = scmp.ne.s32.totalorder %s23, %s24
      %p36 = scmp.eq.s32.totalorder %s19, 1
      %p37 = por %p35, %p36
      %p39 = scmp.ne.s32.totalorder %s24, %s38
      %p40 = scmp.eq.s32.totalorder %s19, 0
      %p41 = por %p39, %p40
      %s42 = ssub.s32 %s13, %s20
      %p43 = scmp.eq.s32.totalorder %s42, 0
      %s45 = sadd.s32 %s44, 1
      %s46 = scalar_select %p43, %s44, %s45
      %p49 = pneg %p43
      %p50 = scmp.eq.s32.totalorder %s13, 1
      %p51 = por %p49, %p50
      %p52 = scmp.ne.s32.totalorder %s44, %s47
      %p53 = scmp.eq.s32.totalorder %s13, 0
      %p54 = por %p52, %p53
      %p55 = scmp.ne.s32.totalorder %s44, %s47
      %p56 = scmp.eq.s32.totalorder %s18, 1
      %p57 = por %p55, %p56
      %p58 = scmp.ne.s32.totalorder %s47, %s48
      %p59 = scmp.eq.s32.totalorder %s18, 0
      %p60 = por %p58, %p59
      %p61 = scmp.ne.s32.totalorder %s47, %s48
      %p62 = scmp.eq.s32.totalorder %s19, 1
      %p63 = por %p61, %p62
      %p65 = scmp.ne.s32.totalorder %s48, %s64
      %p66 = scmp.eq.s32.totalorder %s19, 0
      %p67 = por %p65, %p66
      %s68 = ssub.s32 %s13, %s20
      %p69 = scmp.eq.s32.totalorder %s68, 0
      %s71 = sadd.s32 %s70, 1
      %s72 = scalar_select %p69, %s70, %s71
      %p75 = pneg %p69
      %p76 = scmp.eq.s32.totalorder %s13, 1
      %p77 = por %p75, %p76
      %p78 = scmp.ne.s32.totalorder %s70, %s73
      %p79 = scmp.eq.s32.totalorder %s13, 0
      %p80 = por %p78, %p79
      %p81 = scmp.ne.s32.totalorder %s70, %s73
      %p82 = scmp.eq.s32.totalorder %s18, 1
      %p83 = por %p81, %p82
      %p84 = scmp.ne.s32.totalorder %s73, %s74
      %p85 = scmp.eq.s32.totalorder %s18, 0
      %p86 = por %p84, %p85
      %p87 = scmp.ne.s32.totalorder %s73, %s74
      %p88 = scmp.eq.s32.totalorder %s19, 1
      %p89 = por %p87, %p88
      %p91 = scmp.ne.s32.totalorder %s74, %s90
      %p92 = scmp.eq.s32.totalorder %s19, 0
      %p93 = por %p91, %p92
      %s95 = sadd.s32 %s94, 1
      %p98 = scmp.eq.s32.totalorder %s13, 1
      %p99 = scmp.ne.s32.totalorder %s94, %s96
      %p100 = scmp.eq.s32.totalorder %s13, 0
      %p101 = por %p99, %p100
      %p102 = scmp.ne.s32.totalorder %s94, %s96
      %p103 = scmp.eq.s32.totalorder %s18, 1
      %p104 = por %p102, %p103
      %p105 = scmp.ne.s32.totalorder %s96, %s97
      %p106 = scmp.eq.s32.totalorder %s18, 0
      %p107 = por %p105, %p106
      %p108 = scmp.ne.s32.totalorder %s96, %s97
      %p109 = scmp.eq.s32.totalorder %s19, 1
      %p110 = por %p108, %p109
      %p112 = scmp.ne.s32.totalorder %s97, %s111
      %p113 = scmp.eq.s32.totalorder %s19, 0
      %p114 = por %p112, %p113
      %s116 = sadd.s32 %s115, 1
      %p119 = scmp.eq.s32.totalorder %s13, 1
      %p120 = scmp.ne.s32.totalorder %s115, %s117
      %p121 = scmp.eq.s32.totalorder %s13, 0
      %p122 = por %p120, %p121
      %p123 = scmp.ne.s32.totalorder %s115, %s117
      %p124 = scmp.eq.s32.totalorder %s18, 1
      %p125 = por %p123, %p124
      %p126 = scmp.ne.s32.totalorder %s117, %s118
      %p127 = scmp.eq.s32.totalorder %s18, 0
      %p128 = por %p126, %p127
      %p129 = scmp.ne.s32.totalorder %s117, %s118
      %p130 = scmp.eq.s32.totalorder %s19, 1
      %p131 = por %p129, %p130
      %p133 = scmp.ne.s32.totalorder %s118, %s132
      %p134 = scmp.eq.s32.totalorder %s19, 0
      %p135 = por %p133, %p134
      %s137 = sadd.s32 %s136, 1
      %p140 = scmp.eq.s32.totalorder %s13, 1
      %p141 = scmp.ne.s32.totalorder %s136, %s138
      %p142 = scmp.eq.s32.totalorder %s13, 0
      %p143 = por %p141, %p142
      %p144 = scmp.ne.s32.totalorder %s136, %s138
      %p145 = scmp.eq.s32.totalorder %s18, 1
      %p146 = por %p144, %p145
      %p147 = scmp.ne.s32.totalorder %s138, %s139
      %p148 = scmp.eq.s32.totalorder %s18, 0
      %p149 = por %p147, %p148
      %p150 = scmp.ne.s32.totalorder %s138, %s139
      %p151 = scmp.eq.s32.totalorder %s19, 1
      %p152 = por %p150, %p151
      %p154 = scmp.ne.s32.totalorder %s139, %s153
      %p155 = scmp.eq.s32.totalorder %s19, 0
      %p156 = por %p154, %p155
      %s157 = ssub.s32 %s13, %s20
      %p158 = scmp.eq.s32.totalorder %s157, 0
      %s160 = sadd.s32 %s159, 1
      %s161 = scalar_select %p158, %s159, %s160
      %p164 = pneg %p158
      %p165 = scmp.eq.s32.totalorder %s13, 1
      %p166 = por %p164, %p165
      %p167 = scmp.ne.s32.totalorder %s159, %s162
      %p168 = scmp.eq.s32.totalorder %s13, 0
      %p169 = por %p167, %p168
      %p170 = scmp.ne.s32.totalorder %s159, %s162
      %p171 = scmp.eq.s32.totalorder %s18, 1
      %p172 = por %p170, %p171
      %p173 = scmp.ne.s32.totalorder %s162, %s163
      %p174 = scmp.eq.s32.totalorder %s18, 0
      %p175 = por %p173, %p174
      %p176 = scmp.ne.s32.totalorder %s162, %s163
      %p177 = scmp.eq.s32.totalorder %s19, 1
      %p178 = por %p176, %p177
      %p180 = scmp.ne.s32.totalorder %s163, %s179
      %p181 = scmp.eq.s32.totalorder %s19, 0
      %p182 = por %p180, %p181
      %p183 = scmp.le.s32.totalorder 1, %s13
      %p184 = scmp.lt.s32.totalorder %s13, 3
      %p185 = pnand %p183, %p184
      %p186 = pneg %p185
      // Predicated region
      $region9: #{_forward_impl.1} parent=5 // pred_check
        _
      $region10: #{_forward_impl.1} parent=5 // pred_check_branch
        %188 = sbr.rel (%p185) target = $region12
      $region11: #{_forward_impl.1} parent=5 // pred_region
        %s189 = ssub.s32 %s13, 1
        // Predicated region
        $region13: #{_forward_impl.1} parent=11 // pred_check
          %p190 = pneg %p34
        $region14: #{_forward_impl.1} parent=11 // pred_check_branch
          %192 = sbr.rel (%p190) target = $region16
        $region15: #{_forward_impl.1} parent=11 // pred_region
          %194 = vsyncadd [#allocation3], 0
          %s196 = sshll.u32 %s0, 4
          %s197 = int_to_ptr.vmem [resolvable:$true] %s196
          %199 = dma.vmem_to_smem %s197, 16, [#allocation2], [#allocation3]
        $region16: #{_forward_impl.1} parent=11 // pred_fallthru
          _
        // Predicated region
        $region17: #{_forward_impl.1} parent=11 // pred_check
          %p200 = pneg %p107
        $region18: #{_forward_impl.1} parent=11 // pred_check_branch
          %202 = sbr.rel (%p200) target = $region20
        $region19: #{_forward_impl.1} parent=11 // pred_region
          _
        $region20: #{_forward_impl.1} parent=11 // pred_fallthru
          _
        // Predicated region
        $region21: #{_forward_impl.1} parent=11 // pred_check
          %p203 = pneg %p128
        $region22: #{_forward_impl.1} parent=11 // pred_check_branch
          %205 = sbr.rel (%p203) target = $region24
        $region23: #{_forward_impl.1} parent=11 // pred_region
          _
        $region24: #{_forward_impl.1} parent=11 // pred_fallthru
          _
        // Predicated region
        $region25: #{_forward_impl.1} parent=11 // pred_check
          %p206 = pneg %p149
        $region26: #{_forward_impl.1} parent=11 // pred_check_branch
          %208 = sbr.rel (%p206) target = $region28
        $region27: #{_forward_impl.1} parent=11 // pred_region
          _
        $region28: #{_forward_impl.1} parent=11 // pred_fallthru
          _
      $region12: #{_forward_impl.1} parent=5 // pred_fallthru
        _
      %p209 = scmp.lt.s32.totalorder %s13, 2
      // Predicated region
      $region29: #{_forward_impl.1} parent=5 // pred_check
        %p210 = pneg %p209
      $region30: #{_forward_impl.1} parent=5 // pred_check_branch
        %212 = sbr.rel (%p210) target = $region32
      $region31: #{_forward_impl.1} parent=5 // pred_region
        // Predicated region
        $region33: #{_forward_impl.1} parent=31 // pred_check
          %p213 = pneg %p54
        $region34: #{_forward_impl.1} parent=31 // pred_check_branch
          %215 = sbr.rel (%p213) target = $region36
        $region35: #{_forward_impl.1} parent=31 // pred_region
          %p216 = scmp.lt.s32.totalorder %s13, 1
          %s217 = scalar_select %p216, %s13, 1
          %s218 = smul.addr %s217, 4
          %s219 = smul.addr %s218, 8
          %s220 = scalar_lea.vmem %s1, %s219
        $region36: #{_forward_impl.1} parent=31 // pred_fallthru
          _
        // Predicated region
        $region37: #{_forward_impl.1} parent=31 // pred_check
          %p221 = pneg %p80
        $region38: #{_forward_impl.1} parent=31 // pred_check_branch
          %223 = sbr.rel (%p221) target = $region40
        $region39: #{_forward_impl.1} parent=31 // pred_region
          %p224 = scmp.lt.s32.totalorder %s13, 1
          %s225 = scalar_select %p224, %s13, 1
          %s226 = smul.addr %s225, 4
          %s227 = smul.addr %s226, 8
          %s228 = scalar_lea.vmem %s2, %s227
        $region40: #{_forward_impl.1} parent=31 // pred_fallthru
          _
      $region32: #{_forward_impl.1} parent=5 // pred_fallthru
        _
      %p229 = scmp.le.s32.totalorder 1, %s13
      %p230 = scmp.lt.s32.totalorder %s13, 3
      %p231 = pnand %p229, %p230
      %p232 = pneg %p231
      // Predicated region
      $region41: #{_forward_impl.1} parent=5 // pred_check
        _
      $region42: #{_forward_impl.1} parent=5 // pred_check_branch
        %234 = sbr.rel (%p231) target = $region44
      $region43: #{_forward_impl.1} parent=5 // pred_region
        %s235 = ssub.s32 %s13, 1
        // Predicated region
        $region45: #{_forward_impl.1} parent=43 // pred_check
          %p236 = pneg %p34
        $region46: #{_forward_impl.1} parent=43 // pred_check_branch
          %238 = sbr.rel (%p236) target = $region48
        $region47: #{_forward_impl.1} parent=43 // pred_region
          %240 = dma.done [#allocation3], 16
        $region48: #{_forward_impl.1} parent=43 // pred_fallthru
          _
        %241 = sfence
        %p242 = pneg %p34
        %p243 = pneg %p31
        %p244 = scmp.lt.s32.totalorder %s18, 1
        %s245 = scalar_select %p244, %s18, 1
        %s246 = smul.addr %s245, 4
        %s247 = smul.addr %s246, 8
        %s248 = scalar_lea.vmem %s1, %s247
        %p249 = pneg %p60
        %p250 = pneg %p57
        %p251 = scmp.lt.s32.totalorder %s18, 1
        %s252 = scalar_select %p251, %s18, 1
        %s253 = smul.addr %s252, 4
        %s254 = smul.addr %s253, 8
        %s255 = scalar_lea.vmem %s2, %s254
        %p256 = pneg %p86
        %p257 = pneg %p83
        %p258 = pneg %p107
        %p259 = pneg %p104
        %p260 = pneg %p128
        %p261 = pneg %p125
        %p262 = pneg %p149
        %p263 = pneg %p146
        %p264 = pneg %p175
        %p265 = pneg %p172
        %p266 = scmp.lt.s32.totalorder %s18, 1
        %s267 = scalar_select %p266, %s18, 1
        %s268 = smul.addr %s267, 4
        %s269 = smul.addr %s268, 8
        %s270 = scalar_lea.vmem %s6, %s269
        %p271 = scmp.lt.s32.totalorder %s18, 1
        %s272 = scalar_select %p271, %s18, 1
        %s273 = smul.addr %s272, 4
        %s274 = smul.addr %s273, 8
        %s275 = scalar_lea.vmem %s1, %s274
        %p276 = scmp.lt.s32.totalorder %s18, 1
        %s277 = scalar_select %p276, %s18, 1
        %s278 = smul.addr %s277, 4
        %s279 = smul.addr %s278, 8
        %s280 = scalar_lea.vmem %s2, %s279
        %p281 = scmp.lt.s32.totalorder %s18, 1
        %s282 = scalar_select %p281, %s18, 1
        %s283 = smul.addr %s282, 4
        %s284 = smul.addr %s283, 8
        %s285 = scalar_lea.vmem %s6, %s284
        %v286 = vld [vmem:[%s275] sm:$0xff]
        %v287 = vld [vmem:[%s275 + $0x8] sm:$0xff]
        %v288 = vld [vmem:[%s275 + $0x10] sm:$0xff]
        %v289 = vld [vmem:[%s275 + $0x18] sm:$0xff]
        %v290 = vld [vmem:[%s280] sm:$0xff]
        %v291 = vld [vmem:[%s280 + $0x8] sm:$0xff]
        %v292 = vld [vmem:[%s280 + $0x10] sm:$0xff]
        %v293 = vld [vmem:[%s280 + $0x18] sm:$0xff]
        %v294 = vld [vmem:[%s3] sm:$0xff]
        %v295 = vld [vmem:[%s3 + $0x8] sm:$0xff]
        %v296 = vld [vmem:[%s3 + $0x10] sm:$0xff]
        %v297 = vld [vmem:[%s3 + $0x18] sm:$0xff]
        %v298 = vld [vmem:[%s3 + $0x20] sm:$0xff]
        %v299 = vld [vmem:[%s3 + $0x28] sm:$0xff]
        %v300 = vld [vmem:[%s3 + $0x30] sm:$0xff]
        %v301 = vld [vmem:[%s3 + $0x38] sm:$0xff]
        %v302 = vld [vmem:[%s3 + $0x40] sm:$0xff]
        %v303 = vld [vmem:[%s3 + $0x48] sm:$0xff]
        %v304 = vld [vmem:[%s3 + $0x50] sm:$0xff]
        %v305 = vld [vmem:[%s3 + $0x58] sm:$0xff]
        %v306 = vld [vmem:[%s3 + $0x60] sm:$0xff]
        %v307 = vld [vmem:[%s3 + $0x68] sm:$0xff]
        %v308 = vld [vmem:[%s3 + $0x70] sm:$0xff]
        %v309 = vld [vmem:[%s3 + $0x78] sm:$0xff]
        %v310 = vld [vmem:[%s4] sm:$0x1]
        %v312 = vperm.slane %v310, 0
        %314 = vmatpush.msra.mxu0 %v309
        %315 = vmatpush.msra.mxu0 %v308
        %316 = vmatpush.msra.mxu0 %v307
        %317 = vmatpush.msra.mxu0 %v306
        %318 = vmatpush.msra.mxu0 %v305
        %319 = vmatpush.msra.mxu0 %v304
        %320 = vmatpush.msra.mxu0 %v303
        %321 = vmatpush.msra.mxu0 %v302
        %322 = vmatpush.msra.mxu0 %v301
        %323 = vmatpush.msra.mxu0 %v300
        %324 = vmatpush.msra.mxu0 %v299
        %325 = vmatpush.msra.mxu0 %v298
        %326 = vmatpush.msra.mxu0 %v297
        %327 = vmatpush.msra.mxu0 %v296
        %328 = vmatpush.msra.mxu0 %v295
        %329 = vmatpush.msra.mxu0 %v294
        %330 = vmatmul.f32.gmra.mxu0 %v286
        %v331 = vpop.f32.mrf.mxu0
        %v332 = vadd.f32 %v312, %v331
        %333 = vmatmul.f32.gmra.mxu0 %v287
        %v334 = vpop.f32.mrf.mxu0
        %v335 = vadd.f32 %v312, %v334
        %336 = vmatmul.f32.gmra.mxu0 %v288
        %v337 = vpop.f32.mrf.mxu0
        %v338 = vadd.f32 %v312, %v337
        %339 = vmatmul.f32.gmra.mxu0 %v289
        %v340 = vpop.f32.mrf.mxu0
        %v341 = vadd.f32 %v312, %v340
        %342 = vdwg.mxu0
        %v343 = vtanh.pop %v332
        %v344 = vtanh.pop %v335
        %v345 = vtanh.pop %v338
        %v346 = vtanh.pop %v341
        %v347 = vmul.f32 %v343, %v290
        %v348 = vmul.f32 %v344, %v291
        %v349 = vmul.f32 %v345, %v292
        %v350 = vmul.f32 %v346, %v293
        %s351 = scalar_lea.vmem %s3, 128
        %v352 = vld [vmem:[%s351] sm:$0xff]
        %v353 = vld [vmem:[%s351 + $0x8] sm:$0xff]
        %v354 = vld [vmem:[%s351 + $0x10] sm:$0xff]
        %v355 = vld [vmem:[%s351 + $0x18] sm:$0xff]
        %v356 = vld [vmem:[%s351 + $0x20] sm:$0xff]
        %v357 = vld [vmem:[%s351 + $0x28] sm:$0xff]
        %v358 = vld [vmem:[%s351 + $0x30] sm:$0xff]
        %v359 = vld [vmem:[%s351 + $0x38] sm:$0xff]
        %v360 = vld [vmem:[%s351 + $0x40] sm:$0xff]
        %v361 = vld [vmem:[%s351 + $0x48] sm:$0xff]
        %v362 = vld [vmem:[%s351 + $0x50] sm:$0xff]
        %v363 = vld [vmem:[%s351 + $0x58] sm:$0xff]
        %v364 = vld [vmem:[%s351 + $0x60] sm:$0xff]
        %v365 = vld [vmem:[%s351 + $0x68] sm:$0xff]
        %v366 = vld [vmem:[%s351 + $0x70] sm:$0xff]
        %v367 = vld [vmem:[%s351 + $0x78] sm:$0xff]
        %s368 = scalar_lea.vmem %s4, 1
        %v369 = vld [vmem:[%s368] sm:$0x1]
        %v371 = vperm.slane %v369, 0
        %373 = vmatpush.msra.mxu0 %v367
        %374 = vmatpush.msra.mxu0 %v366
        %375 = vmatpush.msra.mxu0 %v365
        %376 = vmatpush.msra.mxu0 %v364
        %377 = vmatpush.msra.mxu0 %v363
        %378 = vmatpush.msra.mxu0 %v362
        %379 = vmatpush.msra.mxu0 %v361
        %380 = vmatpush.msra.mxu0 %v360
        %381 = vmatpush.msra.mxu0 %v359
        %382 = vmatpush.msra.mxu0 %v358
        %383 = vmatpush.msra.mxu0 %v357
        %384 = vmatpush.msra.mxu0 %v356
        %385 = vmatpush.msra.mxu0 %v355
        %386 = vmatpush.msra.mxu0 %v354
        %387 = vmatpush.msra.mxu0 %v353
        %388 = vmatpush.msra.mxu0 %v352
        %389 = vmatmul.f32.gmra.mxu0 %v347
        %v390 = vpop.f32.mrf.mxu0
        %v391 = vadd.f32 %v371, %v390
        %392 = vmatmul.f32.gmra.mxu0 %v348
        %v393 = vpop.f32.mrf.mxu0
        %v394 = vadd.f32 %v371, %v393
        %395 = vmatmul.f32.gmra.mxu0 %v349
        %v396 = vpop.f32.mrf.mxu0
        %v397 = vadd.f32 %v371, %v396
        %398 = vmatmul.f32.gmra.mxu0 %v350
        %v399 = vpop.f32.mrf.mxu0
        %v400 = vadd.f32 %v371, %v399
        %401 = vdwg.mxu0
        %v402 = vtanh.pop %v391
        %v403 = vtanh.pop %v394
        %v404 = vtanh.pop %v397
        %v405 = vtanh.pop %v400
        %v406 = vmul.f32 %v402, %v290
        %v407 = vmul.f32 %v403, %v291
        %v408 = vmul.f32 %v404, %v292
        %v409 = vmul.f32 %v405, %v293
        %s410 = sld [smem:[#allocation2]]
        %v411 = vstv %s410
        %v412 = vmul.f32 %v411, %v406
        %v413 = vmul.f32 %v411, %v407
        %v414 = vmul.f32 %v411, %v408
        %v415 = vmul.f32 %v411, %v409
        %v416 = vadd.f32 %v412, 0.0
        %v417 = vadd.f32 %v413, 0.0
        %v418 = vadd.f32 %v414, 0.0
        %v419 = vadd.f32 %v415, 0.0
        %s420 = scalar_lea.vmem %s3, 256
        %v421 = vld [vmem:[%s420] sm:$0xff]
        %v422 = vld [vmem:[%s420 + $0x8] sm:$0xff]
        %v423 = vld [vmem:[%s420 + $0x10] sm:$0xff]
        %v424 = vld [vmem:[%s420 + $0x18] sm:$0xff]
        %v425 = vld [vmem:[%s420 + $0x20] sm:$0xff]
        %v426 = vld [vmem:[%s420 + $0x28] sm:$0xff]
        %v427 = vld [vmem:[%s420 + $0x30] sm:$0xff]
        %v428 = vld [vmem:[%s420 + $0x38] sm:$0xff]
        %v429 = vld [vmem:[%s420 + $0x40] sm:$0xff]
        %v430 = vld [vmem:[%s420 + $0x48] sm:$0xff]
        %v431 = vld [vmem:[%s420 + $0x50] sm:$0xff]
        %v432 = vld [vmem:[%s420 + $0x58] sm:$0xff]
        %v433 = vld [vmem:[%s420 + $0x60] sm:$0xff]
        %v434 = vld [vmem:[%s420 + $0x68] sm:$0xff]
        %v435 = vld [vmem:[%s420 + $0x70] sm:$0xff]
        %v436 = vld [vmem:[%s420 + $0x78] sm:$0xff]
        %s437 = scalar_lea.vmem %s4, 2
        %v438 = vld [vmem:[%s437] sm:$0x1]
        %v440 = vperm.slane %v438, 0
        %442 = vmatpush.msra.mxu0 %v436
        %443 = vmatpush.msra.mxu0 %v435
        %444 = vmatpush.msra.mxu0 %v434
        %445 = vmatpush.msra.mxu0 %v433
        %446 = vmatpush.msra.mxu0 %v432
        %447 = vmatpush.msra.mxu0 %v431
        %448 = vmatpush.msra.mxu0 %v430
        %449 = vmatpush.msra.mxu0 %v429
        %450 = vmatpush.msra.mxu0 %v428
        %451 = vmatpush.msra.mxu0 %v427
        %452 = vmatpush.msra.mxu0 %v426
        %453 = vmatpush.msra.mxu0 %v425
        %454 = vmatpush.msra.mxu0 %v424
        %455 = vmatpush.msra.mxu0 %v423
        %456 = vmatpush.msra.mxu0 %v422
        %457 = vmatpush.msra.mxu0 %v421
        %458 = vmatmul.f32.gmra.mxu0 %v406
        %v459 = vpop.f32.mrf.mxu0
        %v460 = vadd.f32 %v440, %v459
        %461 = vmatmul.f32.gmra.mxu0 %v407
        %v462 = vpop.f32.mrf.mxu0
        %v463 = vadd.f32 %v440, %v462
        %464 = vmatmul.f32.gmra.mxu0 %v408
        %v465 = vpop.f32.mrf.mxu0
        %v466 = vadd.f32 %v440, %v465
        %467 = vmatmul.f32.gmra.mxu0 %v409
        %v468 = vpop.f32.mrf.mxu0
        %v469 = vadd.f32 %v440, %v468
        %470 = vdwg.mxu0
        %v471 = vtanh.pop %v460
        %v472 = vtanh.pop %v463
        %v473 = vtanh.pop %v466
        %v474 = vtanh.pop %v469
        %v475 = vmul.f32 %v471, %v290
        %v476 = vmul.f32 %v472, %v291
        %v477 = vmul.f32 %v473, %v292
        %v478 = vmul.f32 %v474, %v293
        %s479 = sld [smem:[#allocation2 + $0x1]]
        %v480 = vstv %s479
        %v481 = vmul.f32 %v480, %v475
        %v482 = vmul.f32 %v480, %v476
        %v483 = vmul.f32 %v480, %v477
        %v484 = vmul.f32 %v480, %v478
        %v485 = vadd.f32 %v416, %v481
        %v486 = vadd.f32 %v417, %v482
        %v487 = vadd.f32 %v418, %v483
        %v488 = vadd.f32 %v419, %v484
        %v489 = vld [vmem:[%s5] sm:$0xff]
        %v490 = vld [vmem:[%s5 + $0x8] sm:$0xff]
        %v491 = vld [vmem:[%s5 + $0x10] sm:$0xff]
        %v492 = vld [vmem:[%s5 + $0x18] sm:$0xff]
        %v493 = vld [vmem:[%s5 + $0x20] sm:$0xff]
        %v494 = vld [vmem:[%s5 + $0x28] sm:$0xff]
        %v495 = vld [vmem:[%s5 + $0x30] sm:$0xff]
        %v496 = vld [vmem:[%s5 + $0x38] sm:$0xff]
        %v497 = vld [vmem:[%s5 + $0x40] sm:$0xff]
        %v498 = vld [vmem:[%s5 + $0x48] sm:$0xff]
        %v499 = vld [vmem:[%s5 + $0x50] sm:$0xff]
        %v500 = vld [vmem:[%s5 + $0x58] sm:$0xff]
        %v501 = vld [vmem:[%s5 + $0x60] sm:$0xff]
        %v502 = vld [vmem:[%s5 + $0x68] sm:$0xff]
        %v503 = vld [vmem:[%s5 + $0x70] sm:$0xff]
        %v504 = vld [vmem:[%s5 + $0x78] sm:$0xff]
        %505 = vmatpush.msra.mxu0 %v504
        %506 = vmatpush.msra.mxu0 %v503
        %507 = vmatpush.msra.mxu0 %v502
        %508 = vmatpush.msra.mxu0 %v501
        %509 = vmatpush.msra.mxu0 %v500
        %510 = vmatpush.msra.mxu0 %v499
        %511 = vmatpush.msra.mxu0 %v498
        %512 = vmatpush.msra.mxu0 %v497
        %513 = vmatpush.msra.mxu0 %v496
        %514 = vmatpush.msra.mxu0 %v495
        %515 = vmatpush.msra.mxu0 %v494
        %516 = vmatpush.msra.mxu0 %v493
        %517 = vmatpush.msra.mxu0 %v492
        %518 = vmatpush.msra.mxu0 %v491
        %519 = vmatpush.msra.mxu0 %v490
        %520 = vmatpush.msra.mxu0 %v489
        %521 = vmatmul.f32.gmra.mxu0 %v485
        %v522 = vpop.f32.mrf.mxu0
        %v523 = vadd.f32 0.0, %v522
        %524 = vmatmul.f32.gmra.mxu0 %v486
        %v525 = vpop.f32.mrf.mxu0
        %v526 = vadd.f32 0.0, %v525
        %527 = vmatmul.f32.gmra.mxu0 %v487
        %v528 = vpop.f32.mrf.mxu0
        %v529 = vadd.f32 0.0, %v528
        %530 = vmatmul.f32.gmra.mxu0 %v488
        %v531 = vpop.f32.mrf.mxu0
        %v532 = vadd.f32 0.0, %v531
        %533 = vdwg.mxu0
        %534 = vst [vmem:[%s285] sm:$0xff] %v523
        %535 = vst [vmem:[%s285 + $0x8] sm:$0xff] %v526
        %536 = vst [vmem:[%s285 + $0x10] sm:$0xff] %v529
        %537 = vst [vmem:[%s285 + $0x18] sm:$0xff] %v532
        %p538 = scmp.lt.s32.totalorder %s18, 1
        %s539 = scalar_select %p538, %s18, 1
        %s540 = smul.addr %s539, 4
        %s541 = smul.addr %s540, 8
        %s542 = scalar_lea.vmem %s6, %s541
        // Predicated region
        $region49: #{_forward_impl.1} parent=43 // pred_check
          %p543 = pneg %p172
        $region50: #{_forward_impl.1} parent=43 // pred_check_branch
          %545 = sbr.rel (%p543) target = $region52
        $region51: #{_forward_impl.1} parent=43 // pred_region
          _
        $region52: #{_forward_impl.1} parent=43 // pred_fallthru
          _
      $region44: #{_forward_impl.1} parent=5 // pred_fallthru
        _
      %p546 = scmp.le.s32.totalorder 2, %s13
      // Predicated region
      $region53: #{_forward_impl.1} parent=5 // pred_check
        %p547 = pneg %p546
      $region54: #{_forward_impl.1} parent=5 // pred_check_branch
        %549 = sbr.rel (%p547) target = $region56
      $region55: #{_forward_impl.1} parent=5 // pred_region
        %s550 = ssub.s32 %s13, 2
        // Predicated region
        $region57: #{_forward_impl.1} parent=55 // pred_check
          %p551 = pneg %p178
        $region58: #{_forward_impl.1} parent=55 // pred_check_branch
          %553 = sbr.rel (%p551) target = $region60
        $region59: #{_forward_impl.1} parent=55 // pred_region
          %p554 = scmp.lt.s32.totalorder %s19, 1
          %s555 = scalar_select %p554, %s19, 1
          %s556 = smul.addr %s555, 4
          %s557 = smul.addr %s556, 8
          %s558 = scalar_lea.vmem %s6, %s557
        $region60: #{_forward_impl.1} parent=55 // pred_fallthru
          _
      $region56: #{_forward_impl.1} parent=5 // pred_fallthru
        _
    $region6: #{_forward_impl.1} parent=1 // loop_footer
      %s17 = sadd.s32 1, %s13
    $region7: #{_forward_impl.1} parent=1 // loop_footer_branch
      %12 = sbr.rel target = $region3
    $region8: #{_forward_impl.1} parent=1 // loop_exit
      _
    %559 = vsyncpa [#allocation3], 1
    %s560 = scalar_lea.sflag [#allocation3], 1
    %561 = vsyncpa %s560, 1

</llo_original>
